<compile_context>
chip_gen: v7x
topology: tpu7x:2x2x1
jax: 0.10.0
libtpu: 0.0.40
codegen_flags: <defaults>
</compile_context>

<pallas_src>
import functools
import math

import jax
import jax.numpy as jnp
import numpy as np
from jax.experimental import pallas as pl
from jax.experimental.pallas import tpu as pltpu

HEAD_CHANNELS = 512  # hardcoded in DecoderCup.__init__


# ---------------------------------------------------------------------------
# Fused Conv3x3(pad=1, stride=1) + BatchNorm(eval, folded) + ReLU Pallas kernel
# (optionally fusing a channel concat by taking several input/weight slices)
# ---------------------------------------------------------------------------
def _conv3x3_kernel(*args, wp, n_in):
    """One (cout-tile, batch) grid step.

    args = x_ref_0..x_ref_{n_in-1}, w_ref_0..w_ref_{n_in-1}, scale, bias, out
      x_ref_i:   (1, (H+3)*wp, Cin_i) bf16  row-flattened zero-padded NHWC slab
      w_ref_i:   (9, Cin_i, TCo)      bf16  3x3 taps, tap t = dy*3 + dx
      scale_ref: (1, TCo)             f32   folded BN scale  gamma/sqrt(var+eps)
      bias_ref:  (1, TCo)             f32   folded BN bias   beta - mean*scale
      o_ref:     (1, H*wp, TCo)       f32   padded-width output rows (junk
                                            columns cropped by the wrapper)
    """
    x_refs = args[:n_in]
    w_refs = args[n_in:2 * n_in]
    scale_ref, bias_ref, o_ref = args[2 * n_in:]
    n = o_ref.shape[1]                    # H * wp output rows
    # conv over concatenated channels == sum of convs over the channel slices;
    # each tap/slice is one plain MXU matmul on shifted flat rows.
    acc = None
    for t in range(9):
        dy, dx = divmod(t, 3)
        off = dy * wp + dx
        for xr, wr in zip(x_refs, w_refs):
            d = jnp.dot(xr[0, off:off + n, :], wr[t],
                        preferred_element_type=jnp.float32)
            acc = d if acc is None else acc + d
    y = jnp.maximum(acc * scale_ref[...] + bias_ref[...], 0.0)  # BN + ReLU, f32
    o_ref[0, :, :] = y.astype(o_ref.dtype)


def conv3x3_bn_relu(xs, p, *, eps=1e-5, co_tile=128):
    """relu(batchnorm_eval(conv3x3_same(concat(xs, axis=-1)))) for NHWC xs.

    xs: NHWC array or list of NHWC arrays (virtual channel concat, fused).
    p:  dict(w=(9, sum(Cin_i), Cout), gamma, beta, mean, var).
    Returns (B, H, W, Cout) float32.
    """
    if not isinstance(xs, (list, tuple)):
        xs = [xs]
    B, H, W, _ = xs[0].shape
    cins = [int(x.shape[-1]) for x in xs]
    assert p["w"].shape[1] == sum(cins)
    Cout = p["w"].shape[-1]
    wp = W + 2                  # padded row width
    n_rows = H * wp             # output rows in padded-width form

    # fold eval-mode BatchNorm into per-channel scale/bias (conv has no bias)
    scale = (p["gamma"] * jax.lax.rsqrt(p["var"] + eps)).astype(jnp.float32)
    bias = (p["beta"] - p["mean"] * scale).astype(jnp.float32)

    # split the conv weight along Cin at the (virtual) concat boundaries
    w_parts, off = [], 0
    for c in cins:
        w_parts.append(p["w"][:, off:off + c, :].astype(jnp.bfloat16))
        off += c

    # zero-pad: 1 top/left/right (SAME conv), 2 at the bottom so the shifted
    # flat slices of the (discarded) junk columns stay in bounds; flatten rows;
    # bf16 MXU feed (f32 accumulation happens inside the kernel).
    x_flats = []
    for x in xs:
        xp = jnp.pad(x.astype(jnp.bfloat16), ((0, 0), (1, 2), (1, 1), (0, 0)))
        x_flats.append(xp.reshape(B, (H + 3) * wp, x.shape[-1]))

    # lane-dense 128-channel output tiles when possible, else full extent
    tco = co_tile if Cout % co_tile == 0 else Cout
    n_co = Cout // tco
    n_in = len(xs)

    in_specs = (
        [pl.BlockSpec((1, (H + 3) * wp, c), lambda co, b: (b, 0, 0))
         for c in cins]                                        # activations
        + [pl.BlockSpec((9, c, tco), lambda co, b: (0, 0, co))
           for c in cins]                                      # weight slices
        + [pl.BlockSpec((1, tco), lambda co, b: (0, co)),      # BN scale
           pl.BlockSpec((1, tco), lambda co, b: (0, co))]      # BN bias
    )

    out_flat = pl.pallas_call(
        functools.partial(_conv3x3_kernel, wp=wp, n_in=n_in),
        out_shape=jax.ShapeDtypeStruct((B, n_rows, Cout), jnp.float32),
        grid=(n_co, B),                 # cout tile outer, batch inner ->
        in_specs=in_specs,              # weights resident across the batch axis
        out_specs=pl.BlockSpec((1, n_rows, tco), lambda co, b: (b, 0, co)),
        compiler_params=pltpu.CompilerParams(
            dimension_semantics=("parallel", "parallel"),  # v7x: 2 TCs split grid
            vmem_limit_bytes=48 * 1024 * 1024,             # < v7x 64 MiB physical
        ),
    )(*x_flats, *w_parts, scale.reshape(1, Cout), bias.reshape(1, Cout))

    # drop the 2 junk columns of every padded-width output row
    return out_flat.reshape(B, H, wp, Cout)[:, :, :W, :]


# ---------------------------------------------------------------------------
# Bilinear 2x upsample (UpsamplingBilinear2d -> align_corners=True)
# ---------------------------------------------------------------------------
def _interp_matrix(n_in):
    n_out = 2 * n_in
    if n_in == 1:
        return jnp.ones((n_out, 1), jnp.float32)
    src = np.arange(n_out, dtype=np.float64) * (n_in - 1) / (n_out - 1)
    lo = np.minimum(np.floor(src).astype(np.int64), n_in - 2)
    frac = src - lo
    m = np.zeros((n_out, n_in), np.float32)
    m[np.arange(n_out), lo] = 1.0 - frac
    m[np.arange(n_out), lo + 1] = frac
    return jnp.asarray(m)


def upsample2x_bilinear(x):
    # TODO(synk): bilinear 2x upsample (align_corners=True) is pure gather-style
    # data movement (<1% of FLOPs); left to XLA in the wrapper.
    B, H, W, C = x.shape
    ah = _interp_matrix(H)
    aw = _interp_matrix(W)
    t = jnp.einsum("ip,bpqc->biqc", ah, x)
    return jnp.einsum("jq,biqc->bijc", aw, t)


# ---------------------------------------------------------------------------
# DecoderCup forward (Pallas conv blocks, NHWC internally, NCHW output)
# ---------------------------------------------------------------------------
def resolve_skip_channels(skip_channels, n_skip):
    sk = list(skip_channels)
    if n_skip != 0:
        for i in range(4 - n_skip):
            sk[3 - i] = 0
    else:
        sk = [0, 0, 0, 0]
    return sk


def decoder_cup_forward(hidden_states, features, params, *, rescale, n_skip):
    B, n_patch, hidden = hidden_states.shape
    h, w = rescale
    assert n_patch == h * w
    # hid2fea: (B,N,C)->permute->(B,C,h,w); in NHWC that is just a reshape.
    x = hidden_states.reshape(B, h, w, hidden)
    x = conv3x3_bn_relu(x, params["conv_more"])
    for i in range(4):
        x = upsample2x_bilinear(x)
        skip = features[i] if (features is not None and i < n_skip) else None
        p1, p2 = params[f"block{i}"]
        if skip is not None and skip.shape[-1] > 0:
            x = conv3x3_bn_relu([x, skip], p1)   # concat fused into the conv
        else:
            x = conv3x3_bn_relu(x, p1)
        x = conv3x3_bn_relu(x, p2)
    return jnp.transpose(x, (0, 3, 1, 2))                # NCHW, like the module


# ---------------------------------------------------------------------------
# Pure-JAX reference (lax.conv) mirroring the same eval-mode semantics
# ---------------------------------------------------------------------------
def _ref_conv_bn_relu(x, p, eps=1e-5):
    Cin = x.shape[-1]
    Cout = p["w"].shape[-1]
    xb = x.astype(jnp.bfloat16).astype(jnp.float32)      # mirror bf16 MXU feed
    wb = p["w"].astype(jnp.bfloat16).astype(jnp.float32).reshape(3, 3, Cin, Cout)
    y = jax.lax.conv_general_dilated(
        xb, wb, window_strides=(1, 1), padding="SAME",
        dimension_numbers=("NHWC", "HWIO", "NHWC"))
    y = (y - p["mean"]) / jnp.sqrt(p["var"] + eps) * p["gamma"] + p["beta"]
    return jnp.maximum(y, 0.0)


def ref_decoder_cup(hidden_states, features, params, *, rescale, n_skip):
    B, n_patch, hidden = hidden_states.shape
    h, w = rescale
    x = hidden_states.reshape(B, h, w, hidden)
    x = _ref_conv_bn_relu(x, params["conv_more"])
    for i in range(4):
        x = upsample2x_bilinear(x)
        skip = features[i] if (features is not None and i < n_skip) else None
        if skip is not None and skip.shape[-1] > 0:
            x = jnp.concatenate([x, skip], axis=-1)       # explicit concat (ref)
        p1, p2 = params[f"block{i}"]
        x = _ref_conv_bn_relu(x, p1)
        x = _ref_conv_bn_relu(x, p2)
    return jnp.transpose(x, (0, 3, 1, 2))


# ---------------------------------------------------------------------------
# Parameter construction (random, deterministic)
# ---------------------------------------------------------------------------
def make_conv_params(key, cin, cout):
    kw, kg, kb, km, kv = jax.random.split(key, 5)
    # (9, cin, cout) == torch Conv2d weight (cout,cin,3,3) permuted to (kh,kw,cin,cout)
    w = jax.random.normal(kw, (9, cin, cout), jnp.float32) * math.sqrt(2.0 / (9 * cin))
    return dict(
        w=w,
        gamma=jax.random.uniform(kg, (cout,), jnp.float32, 0.8, 1.2),
        beta=0.1 * jax.random.normal(kb, (cout,), jnp.float32),
        mean=0.1 * jax.random.normal(km, (cout,), jnp.float32),
        var=jax.random.uniform(kv, (cout,), jnp.float32, 0.8, 1.2),
    )


def build_decoder_cup_params(key, *, hidden_size, decoder_channels, skip_channels, n_skip):
    sk = resolve_skip_channels(skip_channels, n_skip)
    in_channels = [HEAD_CHANNELS] + list(decoder_channels[:-1])
    out_channels = list(decoder_channels)
    params = {}
    key, k = jax.random.split(key)
    params["conv_more"] = make_conv_params(k, hidden_size, HEAD_CHANNELS)
    for i, (ic, oc, s) in enumerate(zip(in_channels, out_channels, sk)):
        key, k1, k2 = jax.random.split(key, 3)
        params[f"block{i}"] = (make_conv_params(k1, ic + s, oc),
                               make_conv_params(k2, oc, oc))
    return params, sk


if __name__ == "__main__":
    # toy TransUNet-like config
    B = 2
    hidden_size = 32
    rescale = (4, 4)                     # config.rescale -> (h, w); n_patch = 16
    n_patch = rescale[0] * rescale[1]
    decoder_channels = (64, 32, 16, 16)  # config.decoder_channels
    skip_channels = [32, 16, 8, 0]       # config.skip_channels
    n_skip = 3                           # config.n_skip

    key = jax.random.PRNGKey(0)
    kp, kh, k0, k1, k2 = jax.random.split(key, 5)

    params, sk = build_decoder_cup_params(
        kp, hidden_size=hidden_size, decoder_channels=decoder_channels,
        skip_channels=skip_channels, n_skip=n_skip)

    hidden_states = jax.random.normal(kh, (B, n_patch, hidden_size), jnp.float32)
    h0, w0 = rescale
    # NHWC skip features matching each block's upsampled resolution
    features = [
        jax.random.normal(k0, (B, 2 * h0, 2 * w0, sk[0]), jnp.float32),
        jax.random.normal(k1, (B, 4 * h0, 4 * w0, sk[1]), jnp.float32),
        jax.random.normal(k2, (B, 8 * h0, 8 * w0, sk[2]), jnp.float32),
    ]

    y = decoder_cup_forward(hidden_states, features, params,
                            rescale=rescale, n_skip=n_skip)
    y = jax.block_until_ready(y)

    y_ref = ref_decoder_cup(hidden_states, features, params,
                            rescale=rescale, n_skip=n_skip)
    y_ref = jax.block_until_ready(y_ref)

    assert y.shape == (B, decoder_channels[-1], 16 * h0, 16 * w0), y.shape
    rel_err = float(jnp.max(jnp.abs(y - y_ref)) / (jnp.max(jnp.abs(y_ref)) + 1e-6))
    assert rel_err < 2e-2, f"rel_err={rel_err}"

    print("KERNEL_OK")
</pallas_src>

<mosaic_0001>
module attributes {stable_mosaic.version = 11 : i64} {
  func.func @_conv3x3_kernel(%arg0: i32, %arg1: i32, %arg2: memref<1x42x32xbf16, #tpu.memory_space<vmem>>, %arg3: memref<9x32x128xbf16, #tpu.memory_space<vmem>>, %arg4: memref<1x128xf32, #tpu.memory_space<vmem>>, %arg5: memref<1x128xf32, #tpu.memory_space<vmem>>, %arg6: memref<1x24x128xf32, #tpu.memory_space<vmem>>) attributes {dimension_semantics = [#tpu.dimension_semantics<parallel>, #tpu.dimension_semantics<parallel>], iteration_bounds = array<i64: 4, 2>, scalar_prefetch = 0 : i64, scratch_operands = 0 : i64, tpu.core_type = #tpu.core_type<tc>, window_params = [{transform_indices = @transform_0, window_bounds = array<i64: 1, 42, 32>}, {transform_indices = @transform_1, window_bounds = array<i64: 9, 32, 128>}, {transform_indices = @transform_2, window_bounds = array<i64: 1, 128>}, {transform_indices = @transform_3, window_bounds = array<i64: 1, 128>}, {transform_indices = @transform_4, window_bounds = array<i64: 1, 24, 128>}]} {
    %c0 = arith.constant 0 : index
    %c0_0 = arith.constant 0 : index
    %c0_1 = arith.constant 0 : index
    %0 = vector.load %arg2[%c0, %c0_0, %c0_1] : memref<1x42x32xbf16, #tpu.memory_space<vmem>>, vector<1x24x32xbf16>
    %1 = vector.shape_cast %0 : vector<1x24x32xbf16> to vector<24x32xbf16>
    %c0_2 = arith.constant 0 : index
    %c0_3 = arith.constant 0 : index
    %c0_4 = arith.constant 0 : index
    %2 = vector.load %arg3[%c0_2, %c0_3, %c0_4] : memref<9x32x128xbf16, #tpu.memory_space<vmem>>, vector<1x32x128xbf16>
    %3 = vector.shape_cast %2 : vector<1x32x128xbf16> to vector<32x128xbf16>
    %cst = arith.constant dense<0.000000e+00> : vector<24x128xf32>
    %4 = tpu.matmul %1, %3, %cst {dimension_numbers = #tpu.dot_dimension_numbers<[1], [0], [0], [1], [0, 0, 1, 1], [], []>} : vector<24x32xbf16>, vector<32x128xbf16>, vector<24x128xf32> -> vector<24x128xf32>
    %c0_5 = arith.constant 0 : index
    %c1 = arith.constant 1 : index
    %c0_6 = arith.constant 0 : index
    %5 = vector.load %arg2[%c0_5, %c1, %c0_6] : memref<1x42x32xbf16, #tpu.memory_space<vmem>>, vector<1x24x32xbf16>
    %6 = vector.shape_cast %5 : vector<1x24x32xbf16> to vector<24x32xbf16>
    %c1_7 = arith.constant 1 : index
    %c0_8 = arith.constant 0 : index
    %c0_9 = arith.constant 0 : index
    %7 = vector.load %arg3[%c1_7, %c0_8, %c0_9] : memref<9x32x128xbf16, #tpu.memory_space<vmem>>, vector<1x32x128xbf16>
    %8 = vector.shape_cast %7 : vector<1x32x128xbf16> to vector<32x128xbf16>
    %cst_10 = arith.constant dense<0.000000e+00> : vector<24x128xf32>
    %9 = tpu.matmul %6, %8, %cst_10 {dimension_numbers = #tpu.dot_dimension_numbers<[1], [0], [0], [1], [0, 0, 1, 1], [], []>} : vector<24x32xbf16>, vector<32x128xbf16>, vector<24x128xf32> -> vector<24x128xf32>
    %10 = arith.addf %4, %9 : vector<24x128xf32>
    %c0_11 = arith.constant 0 : index
    %c2 = arith.constant 2 : index
    %c0_12 = arith.constant 0 : index
    %11 = vector.load %arg2[%c0_11, %c2, %c0_12] : memref<1x42x32xbf16, #tpu.memory_space<vmem>>, vector<1x24x32xbf16>
    %12 = vector.shape_cast %11 : vector<1x24x32xbf16> to vector<24x32xbf16>
    %c2_13 = arith.constant 2 : index
    %c0_14 = arith.constant 0 : index
    %c0_15 = arith.constant 0 : index
    %13 = vector.load %arg3[%c2_13, %c0_14, %c0_15] : memref<9x32x128xbf16, #tpu.memory_space<vmem>>, vector<1x32x128xbf16>
    %14 = vector.shape_cast %13 : vector<1x32x128xbf16> to vector<32x128xbf16>
    %cst_16 = arith.constant dense<0.000000e+00> : vector<24x128xf32>
    %15 = tpu.matmul %12, %14, %cst_16 {dimension_numbers = #tpu.dot_dimension_numbers<[1], [0], [0], [1], [0, 0, 1, 1], [], []>} : vector<24x32xbf16>, vector<32x128xbf16>, vector<24x128xf32> -> vector<24x128xf32>
    %16 = arith.addf %10, %15 : vector<24x128xf32>
    %c0_17 = arith.constant 0 : index
    %c6 = arith.constant 6 : index
    %c0_18 = arith.constant 0 : index
    %17 = vector.load %arg2[%c0_17, %c6, %c0_18] : memref<1x42x32xbf16, #tpu.memory_space<vmem>>, vector<1x24x32xbf16>
    %18 = vector.shape_cast %17 : vector<1x24x32xbf16> to vector<24x32xbf16>
    %c3 = arith.constant 3 : index
    %c0_19 = arith.constant 0 : index
    %c0_20 = arith.constant 0 : index
    %19 = vector.load %arg3[%c3, %c0_19, %c0_20] : memref<9x32x128xbf16, #tpu.memory_space<vmem>>, vector<1x32x128xbf16>
    %20 = vector.shape_cast %19 : vector<1x32x128xbf16> to vector<32x128xbf16>
    %cst_21 = arith.constant dense<0.000000e+00> : vector<24x128xf32>
    %21 = tpu.matmul %18, %20, %cst_21 {dimension_numbers = #tpu.dot_dimension_numbers<[1], [0], [0], [1], [0, 0, 1, 1], [], []>} : vector<24x32xbf16>, vector<32x128xbf16>, vector<24x128xf32> -> vector<24x128xf32>
    %22 = arith.addf %16, %21 : vector<24x128xf32>
    %c0_22 = arith.constant 0 : index
    %c7 = arith.constant 7 : index
    %c0_23 = arith.constant 0 : index
    %23 = vector.load %arg2[%c0_22, %c7, %c0_23] : memref<1x42x32xbf16, #tpu.memory_space<vmem>>, vector<1x24x32xbf16>
    %24 = vector.shape_cast %23 : vector<1x24x32xbf16> to vector<24x32xbf16>
    %c4 = arith.constant 4 : index
    %c0_24 = arith.constant 0 : index
    %c0_25 = arith.constant 0 : index
    %25 = vector.load %arg3[%c4, %c0_24, %c0_25] : memref<9x32x128xbf16, #tpu.memory_space<vmem>>, vector<1x32x128xbf16>
    %26 = vector.shape_cast %25 : vector<1x32x128xbf16> to vector<32x128xbf16>
    %cst_26 = arith.constant dense<0.000000e+00> : vector<24x128xf32>
    %27 = tpu.matmul %24, %26, %cst_26 {dimension_numbers = #tpu.dot_dimension_numbers<[1], [0], [0], [1], [0, 0, 1, 1], [], []>} : vector<24x32xbf16>, vector<32x128xbf16>, vector<24x128xf32> -> vector<24x128xf32>
    %28 = arith.addf %22, %27 : vector<24x128xf32>
    %c0_27 = arith.constant 0 : index
    %c8 = arith.constant 8 : index
    %c0_28 = arith.constant 0 : index
    %29 = vector.load %arg2[%c0_27, %c8, %c0_28] : memref<1x42x32xbf16, #tpu.memory_space<vmem>>, vector<1x24x32xbf16>
    %30 = vector.shape_cast %29 : vector<1x24x32xbf16> to vector<24x32xbf16>
    %c5 = arith.constant 5 : index
    %c0_29 = arith.constant 0 : index
    %c0_30 = arith.constant 0 : index
    %31 = vector.load %arg3[%c5, %c0_29, %c0_30] : memref<9x32x128xbf16, #tpu.memory_space<vmem>>, vector<1x32x128xbf16>
    %32 = vector.shape_cast %31 : vector<1x32x128xbf16> to vector<32x128xbf16>
    %cst_31 = arith.constant dense<0.000000e+00> : vector<24x128xf32>
    %33 = tpu.matmul %30, %32, %cst_31 {dimension_numbers = #tpu.dot_dimension_numbers<[1], [0], [0], [1], [0, 0, 1, 1], [], []>} : vector<24x32xbf16>, vector<32x128xbf16>, vector<24x128xf32> -> vector<24x128xf32>
    %34 = arith.addf %28, %33 : vector<24x128xf32>
    %c0_32 = arith.constant 0 : index
    %c12 = arith.constant 12 : index
    %c0_33 = arith.constant 0 : index
    %35 = vector.load %arg2[%c0_32, %c12, %c0_33] : memref<1x42x32xbf16, #tpu.memory_space<vmem>>, vector<1x24x32xbf16>
    %36 = vector.shape_cast %35 : vector<1x24x32xbf16> to vector<24x32xbf16>
    %c6_34 = arith.constant 6 : index
    %c0_35 = arith.constant 0 : index
    %c0_36 = arith.constant 0 : index
    %37 = vector.load %arg3[%c6_34, %c0_35, %c0_36] : memref<9x32x128xbf16, #tpu.memory_space<vmem>>, vector<1x32x128xbf16>
    %38 = vector.shape_cast %37 : vector<1x32x128xbf16> to vector<32x128xbf16>
    %cst_37 = arith.constant dense<0.000000e+00> : vector<24x128xf32>
    %39 = tpu.matmul %36, %38, %cst_37 {dimension_numbers = #tpu.dot_dimension_numbers<[1], [0], [0], [1], [0, 0, 1, 1], [], []>} : vector<24x32xbf16>, vector<32x128xbf16>, vector<24x128xf32> -> vector<24x128xf32>
    %40 = arith.addf %34, %39 : vector<24x128xf32>
    %c0_38 = arith.constant 0 : index
    %c13 = arith.constant 13 : index
    %c0_39 = arith.constant 0 : index
    %41 = vector.load %arg2[%c0_38, %c13, %c0_39] : memref<1x42x32xbf16, #tpu.memory_space<vmem>>, vector<1x24x32xbf16>
    %42 = vector.shape_cast %41 : vector<1x24x32xbf16> to vector<24x32xbf16>
    %c7_40 = arith.constant 7 : index
    %c0_41 = arith.constant 0 : index
    %c0_42 = arith.constant 0 : index
    %43 = vector.load %arg3[%c7_40, %c0_41, %c0_42] : memref<9x32x128xbf16, #tpu.memory_space<vmem>>, vector<1x32x128xbf16>
    %44 = vector.shape_cast %43 : vector<1x32x128xbf16> to vector<32x128xbf16>
    %cst_43 = arith.constant dense<0.000000e+00> : vector<24x128xf32>
    %45 = tpu.matmul %42, %44, %cst_43 {dimension_numbers = #tpu.dot_dimension_numbers<[1], [0], [0], [1], [0, 0, 1, 1], [], []>} : vector<24x32xbf16>, vector<32x128xbf16>, vector<24x128xf32> -> vector<24x128xf32>
    %46 = arith.addf %40, %45 : vector<24x128xf32>
    %c0_44 = arith.constant 0 : index
    %c14 = arith.constant 14 : index
    %c0_45 = arith.constant 0 : index
    %47 = vector.load %arg2[%c0_44, %c14, %c0_45] : memref<1x42x32xbf16, #tpu.memory_space<vmem>>, vector<1x24x32xbf16>
    %48 = vector.shape_cast %47 : vector<1x24x32xbf16> to vector<24x32xbf16>
    %c8_46 = arith.constant 8 : index
    %c0_47 = arith.constant 0 : index
    %c0_48 = arith.constant 0 : index
    %49 = vector.load %arg3[%c8_46, %c0_47, %c0_48] : memref<9x32x128xbf16, #tpu.memory_space<vmem>>, vector<1x32x128xbf16>
    %50 = vector.shape_cast %49 : vector<1x32x128xbf16> to vector<32x128xbf16>
    %cst_49 = arith.constant dense<0.000000e+00> : vector<24x128xf32>
    %51 = tpu.matmul %48, %50, %cst_49 {dimension_numbers = #tpu.dot_dimension_numbers<[1], [0], [0], [1], [0, 0, 1, 1], [], []>} : vector<24x32xbf16>, vector<32x128xbf16>, vector<24x128xf32> -> vector<24x128xf32>
    %52 = arith.addf %46, %51 : vector<24x128xf32>
    %c0_50 = arith.constant 0 : index
    %c0_51 = arith.constant 0 : index
    %53 = vector.load %arg4[%c0_50, %c0_51] : memref<1x128xf32, #tpu.memory_space<vmem>>, vector<1x128xf32>
    %54 = vector.broadcast %53 : vector<1x128xf32> to vector<24x128xf32>
    %55 = arith.mulf %52, %54 : vector<24x128xf32>
    %c0_52 = arith.constant 0 : index
    %c0_53 = arith.constant 0 : index
    %56 = vector.load %arg5[%c0_52, %c0_53] : memref<1x128xf32, #tpu.memory_space<vmem>>, vector<1x128xf32>
    %57 = vector.broadcast %56 : vector<1x128xf32> to vector<24x128xf32>
    %58 = arith.addf %55, %57 : vector<24x128xf32>
    %cst_54 = arith.constant 0.000000e+00 : f32
    %59 = vector.broadcast %cst_54 : f32 to vector<24x128xf32>
    %60 = arith.maximumf %58, %59 : vector<24x128xf32>
    %c0_55 = arith.constant 0 : index
    %c0_56 = arith.constant 0 : index
    %c0_57 = arith.constant 0 : index
    %61 = vector.load %arg6[%c0_55, %c0_56, %c0_57] : memref<1x24x128xf32, #tpu.memory_space<vmem>>, vector<1x24x128xf32>
    %62 = vector.shape_cast %61 : vector<1x24x128xf32> to vector<24x128xf32>
    %63 = vector.shape_cast %60 : vector<24x128xf32> to vector<1x24x128xf32>
    tpu.vector_store %arg6[%c0_55, %c0_56, %c0_57], %63 {strides = array<i32>} : memref<1x24x128xf32, #tpu.memory_space<vmem>>, vector<1x24x128xf32>,
    return
  }
  func.func @transform_0(%arg0: i32, %arg1: i32) -> (i32, i32, i32) {
    %c0_i32 = arith.constant 0 : i32
    %c0_i32_0 = arith.constant 0 : i32
    %c0_i32_1 = arith.constant 0 : i32
    return %arg1, %c0_i32, %c0_i32_0 : i32, i32, i32
  }
  func.func @transform_1(%arg0: i32, %arg1: i32) -> (i32, i32, i32) {
    %c0_i32 = arith.constant 0 : i32
    %c0_i32_0 = arith.constant 0 : i32
    %c0_i32_1 = arith.constant 0 : i32
    return %c0_i32, %c0_i32_0, %arg0 : i32, i32, i32
  }
  func.func @transform_2(%arg0: i32, %arg1: i32) -> (i32, i32) {
    %c0_i32 = arith.constant 0 : i32
    %c0_i32_0 = arith.constant 0 : i32
    return %c0_i32, %arg0 : i32, i32
  }
  func.func @transform_3(%arg0: i32, %arg1: i32) -> (i32, i32) {
    %c0_i32 = arith.constant 0 : i32
    %c0_i32_0 = arith.constant 0 : i32
    return %c0_i32, %arg0 : i32, i32
  }
  func.func @transform_4(%arg0: i32, %arg1: i32) -> (i32, i32, i32) {
    %c0_i32 = arith.constant 0 : i32
    %c0_i32_0 = arith.constant 0 : i32
    return %arg1, %c0_i32, %arg0 : i32, i32, i32
  }
}

</mosaic_0001>

<llo_original>
// kernel: tpu_custom_call.1
$region0: #{tpu_custom_call.1}
  #allocation0 [shape = 'u32[]', space=smem, size = 0x4, offset = 0x4, fixed_abs, tag = 'smem constant byte address 0x4 - core index']
  #allocation1 [shape = 'u32[144,128]{1,0:T(1,128)}', space=vmem, size = 0x12000, scoped, tag = 'internal scratch']
  %s0 = inlined_call_operand.vmem [shape: bf16[2,42,32], index: 0, kind: input, shape index: {}]
  %s1 = inlined_call_operand.hbm [shape: bf16[9,32,512], index: 1, kind: input, shape index: {}]
  %s2 = inlined_call_operand.vmem [shape: f32[1,512], index: 2, kind: input, shape index: {}]
  %s3 = inlined_call_operand.vmem [shape: f32[1,512], index: 3, kind: input, shape index: {}]
  %s4 = inlined_call_operand.hbm [shape: f32[2,24,512], index: 4, kind: output, shape index: {}]
  %s5 = sld [smem:[#allocation0]]
  $region53: #{tpu_custom_call.1} parent=0
    _
  %s7 = ssub.s32 1, %s5
  %s8 = scalar_select 0, %s7, %s5
  $region1: #{tpu_custom_call.1} parent=0
    #allocation2 [shape = 'u8[147456]{0}', space=vmem, size = 0x24000, scoped, tag = 'input window, operand 1']
    #allocation3 [shape = 's32[2]{0}', space=sflag, size = 0x8, scoped, tag = 'scoped memory for tpu_custom_call.1']
    #allocation4 [shape = 's32[2]{0}', space=sflag, size = 0x8, scoped, tag = 'scoped memory for tpu_custom_call.1']
    #allocation5 [shape = 'u8[24576]{0}', space=vmem, size = 0x6000, scoped, tag = 'output window, operand 0']
    %9 = vsyncpa [#allocation3], 0
    %s10 = scalar_lea.sflag [#allocation3], 1
    %11 = vsyncpa %s10, 0
    %12 = vsyncpa [#allocation4], 0
    %s13 = scalar_lea.sflag [#allocation4], 1
    %14 = vsyncpa %s13, 0
    loop: start=0, step=1, limit=10
    $region2: #{tpu_custom_call.1} parent=1 // loop_pre_header
      _
    $region3: #{tpu_custom_call.1} parent=1 // loop_header
      %s16 = sphi 0, %s20
      %p17 = scmp.ge.s32.totalorder %s16, 10
      %s23 = sphi 0, %s35
      %s24 = sphi 0, %s31
      %s25 = sphi 0, %s23
      %s26 = sphi 0, %s24
      %s27 = sphi 0, %s25
      %s28 = sphi 0, %s26
      %s38 = sphi 0, %s40
      %s41 = sphi 0, %s38
      %s42 = sphi 0, %s41
      %s58 = sphi 0, %s42
      %s64 = sphi 0, %s66
      %s67 = sphi 0, %s64
      %s68 = sphi 0, %s67
      %s84 = sphi 0, %s68
      %s90 = sphi 0, %s92
      %s93 = sphi 0, %s90
      %s94 = sphi 0, %s93
      %s110 = sphi 0, %s94
      %s116 = sphi 0, %s118
      %s119 = sphi 0, %s116
      %s120 = sphi 0, %s119
      %s136 = sphi 0, %s120
      %s144 = sphi 0, %s146
      %s147 = sphi 0, %s144
      %s148 = sphi 0, %s147
      %s164 = sphi 0, %s148
    $region4: #{tpu_custom_call.1} parent=1 // loop_header_branch
      %19 = sbr.rel (%p17) target = $region8
    $region5: #{tpu_custom_call.1} parent=1 // loop_body
      %s21 = ssub.s32 %s16, 1
      %s22 = ssub.s32 %s16, 2
      %s29 = sadd.s32 1, %s24
      %p30 = scmp.ge.s32.totalorder %s29, 2
      %s31 = scalar_select %p30, 0, %s29
      %s32 = sadd.s32 1, %s23
      %s33 = scalar_select %p30, %s32, %s23
      %p34 = scmp.ge.s32.totalorder %s33, 4
      %s35 = scalar_select %p34, 0, %s33
      %s36 = ssub.s32 %s24, %s31
      %p37 = scmp.eq.s32.totalorder %s36, 0
      %s39 = sadd.s32 %s38, 1
      %s40 = scalar_select %p37, %s38, %s39
      %p43 = pneg %p37
      %p44 = scmp.eq.s32.totalorder %s16, 7
      %p45 = por %p43, %p44
      %p46 = scmp.ne.s32.totalorder %s38, %s41
      %p47 = scmp.eq.s32.totalorder %s16, 0
      %p48 = por %p46, %p47
      %p49 = scmp.ne.s32.totalorder %s38, %s41
      %p50 = scmp.eq.s32.totalorder %s21, 7
      %p51 = por %p49, %p50
      %p52 = scmp.ne.s32.totalorder %s41, %s42
      %p53 = scmp.eq.s32.totalorder %s21, 0
      %p54 = por %p52, %p53
      %p55 = scmp.ne.s32.totalorder %s41, %s42
      %p56 = scmp.eq.s32.totalorder %s22, 7
      %p57 = por %p55, %p56
      %p59 = scmp.ne.s32.totalorder %s42, %s58
      %p60 = scmp.eq.s32.totalorder %s22, 0
      %p61 = por %p59, %p60
      %s62 = ssub.s32 %s23, %s35
      %p63 = scmp.eq.s32.totalorder %s62, 0
      %s65 = sadd.s32 %s64, 1
      %s66 = scalar_select %p63, %s64, %s65
      %p69 = pneg %p63
      %p70 = scmp.eq.s32.totalorder %s16, 7
      %p71 = por %p69, %p70
      %p72 = scmp.ne.s32.totalorder %s64, %s67
      %p73 = scmp.eq.s32.totalorder %s16, 0
      %p74 = por %p72, %p73
      %p75 = scmp.ne.s32.totalorder %s64, %s67
      %p76 = scmp.eq.s32.totalorder %s21, 7
      %p77 = por %p75, %p76
      %p78 = scmp.ne.s32.totalorder %s67, %s68
      %p79 = scmp.eq.s32.totalorder %s21, 0
      %p80 = por %p78, %p79
      %p81 = scmp.ne.s32.totalorder %s67, %s68
      %p82 = scmp.eq.s32.totalorder %s22, 7
      %p83 = por %p81, %p82
      %p85 = scmp.ne.s32.totalorder %s68, %s84
      %p86 = scmp.eq.s32.totalorder %s22, 0
      %p87 = por %p85, %p86
      %s88 = ssub.s32 %s23, %s35
      %p89 = scmp.eq.s32.totalorder %s88, 0
      %s91 = sadd.s32 %s90, 1
      %s92 = scalar_select %p89, %s90, %s91
      %p95 = pneg %p89
      %p96 = scmp.eq.s32.totalorder %s16, 7
      %p97 = por %p95, %p96
      %p98 = scmp.ne.s32.totalorder %s90, %s93
      %p99 = scmp.eq.s32.totalorder %s16, 0
      %p100 = por %p98, %p99
      %p101 = scmp.ne.s32.totalorder %s90, %s93
      %p102 = scmp.eq.s32.totalorder %s21, 7
      %p103 = por %p101, %p102
      %p104 = scmp.ne.s32.totalorder %s93, %s94
      %p105 = scmp.eq.s32.totalorder %s21, 0
      %p106 = por %p104, %p105
      %p107 = scmp.ne.s32.totalorder %s93, %s94
      %p108 = scmp.eq.s32.totalorder %s22, 7
      %p109 = por %p107, %p108
      %p111 = scmp.ne.s32.totalorder %s94, %s110
      %p112 = scmp.eq.s32.totalorder %s22, 0
      %p113 = por %p111, %p112
      %s114 = ssub.s32 %s23, %s35
      %p115 = scmp.eq.s32.totalorder %s114, 0
      %s117 = sadd.s32 %s116, 1
      %s118 = scalar_select %p115, %s116, %s117
      %p121 = pneg %p115
      %p122 = scmp.eq.s32.totalorder %s16, 7
      %p123 = por %p121, %p122
      %p124 = scmp.ne.s32.totalorder %s116, %s119
      %p125 = scmp.eq.s32.totalorder %s16, 0
      %p126 = por %p124, %p125
      %p127 = scmp.ne.s32.totalorder %s116, %s119
      %p128 = scmp.eq.s32.totalorder %s21, 7
      %p129 = por %p127, %p128
      %p130 = scmp.ne.s32.totalorder %s119, %s120
      %p131 = scmp.eq.s32.totalorder %s21, 0
      %p132 = por %p130, %p131
      %p133 = scmp.ne.s32.totalorder %s119, %s120
      %p134 = scmp.eq.s32.totalorder %s22, 7
      %p135 = por %p133, %p134
      %p137 = scmp.ne.s32.totalorder %s120, %s136
      %p138 = scmp.eq.s32.totalorder %s22, 0
      %p139 = por %p137, %p138
      %s140 = ssub.s32 %s24, %s31
      %s141 = ssub.s32 %s23, %s35
      %s142 = sor.u32 %s140, %s141
      %p143 = scmp.eq.s32.totalorder %s142, 0
      %s145 = sadd.s32 %s144, 1
      %s146 = scalar_select %p143, %s144, %s145
      %p149 = pneg %p143
      %p150 = scmp.eq.s32.totalorder %s16, 7
      %p151 = por %p149, %p150
      %p152 = scmp.ne.s32.totalorder %s144, %s147
      %p153 = scmp.eq.s32.totalorder %s16, 0
      %p154 = por %p152, %p153
      %p155 = scmp.ne.s32.totalorder %s144, %s147
      %p156 = scmp.eq.s32.totalorder %s21, 7
      %p157 = por %p155, %p156
      %p158 = scmp.ne.s32.totalorder %s147, %s148
      %p159 = scmp.eq.s32.totalorder %s21, 0
      %p160 = por %p158, %p159
      %p161 = scmp.ne.s32.totalorder %s147, %s148
      %p162 = scmp.eq.s32.totalorder %s22, 7
      %p163 = por %p161, %p162
      %p165 = scmp.ne.s32.totalorder %s148, %s164
      %p166 = scmp.eq.s32.totalorder %s22, 0
      %p167 = por %p165, %p166
      %p168 = scmp.le.s32.totalorder 1, %s16
      %p169 = scmp.lt.s32.totalorder %s16, 9
      %p170 = pnand %p168, %p169
      %p171 = pneg %p170
      // Predicated region
      $region9: #{tpu_custom_call.1} parent=5 // pred_check
        _
      $region10: #{tpu_custom_call.1} parent=5 // pred_check_branch
        %173 = sbr.rel (%p170) target = $region12
      $region11: #{tpu_custom_call.1} parent=5 // pred_region
        %s174 = ssub.s32 %s16, 1
      $region12: #{tpu_custom_call.1} parent=5 // pred_fallthru
        _
      %p175 = scmp.lt.s32.totalorder %s16, 8
      // Predicated region
      $region13: #{tpu_custom_call.1} parent=5 // pred_check
        %p176 = pneg %p175
      $region14: #{tpu_custom_call.1} parent=5 // pred_check_branch
        %178 = sbr.rel (%p176) target = $region16
      $region15: #{tpu_custom_call.1} parent=5 // pred_region
        // Predicated region
        $region17: #{tpu_custom_call.1} parent=15 // pred_check
          %p179 = pneg %p48
        $region18: #{tpu_custom_call.1} parent=15 // pred_check_branch
          %181 = sbr.rel (%p179) target = $region20
        $region19: #{tpu_custom_call.1} parent=15 // pred_region
          %p182 = scmp.lt.s32.totalorder %s24, 1
          %s183 = scalar_select %p182, %s24, 1
          %s184 = smul.addr %s183, 6
          %s185 = smul.addr %s184, 4
          %s186 = scalar_lea.vmem %s0, %s185
        $region20: #{tpu_custom_call.1} parent=15 // pred_fallthru
          _
        // Predicated region
        $region21: #{tpu_custom_call.1} parent=15 // pred_check
          %p187 = pneg %p74
        $region22: #{tpu_custom_call.1} parent=15 // pred_check_branch
          %189 = sbr.rel (%p187) target = $region24
        $region23: #{tpu_custom_call.1} parent=15 // pred_region
          %s190 = sand.u32 %s64, 1
          %s191 = scalar_lea.sflag [#allocation3], %s190
          %s192 = sand.u32 %s64, 1
          %s193 = smul.addr %s192, 144
          %s194 = scalar_lea.vmem [#allocation2], %s193
          %s196 = ssub.s32 2304, 2304
          %197 = vsyncadd %s191, %s196
          %s198 = smul.addr %s23, 64
          %s199 = scalar_lea.hbm %s1, %s198
          %s200 = sshll.u32 %s194, 4
          %s201 = int_to_ptr.vmem [resolvable:$true] %s200
          %206 = dma.hbm_to_vmem [thread:$0]  %s199, 2304, %s201, %s191, 256, 64, 4
        $region24: #{tpu_custom_call.1} parent=15 // pred_fallthru
          _
        // Predicated region
        $region25: #{tpu_custom_call.1} parent=15 // pred_check
          %p207 = pneg %p100
        $region26: #{tpu_custom_call.1} parent=15 // pred_check_branch
          %209 = sbr.rel (%p207) target = $region28
        $region27: #{tpu_custom_call.1} parent=15 // pred_region
          %p210 = scmp.lt.s32.totalorder %s23, 3
          %s211 = scalar_select %p210, %s23, 3
          %s212 = scalar_lea.vmem %s2, %s211
        $region28: #{tpu_custom_call.1} parent=15 // pred_fallthru
          _
        // Predicated region
        $region29: #{tpu_custom_call.1} parent=15 // pred_check
          %p213 = pneg %p126
        $region30: #{tpu_custom_call.1} parent=15 // pred_check_branch
          %215 = sbr.rel (%p213) target = $region32
        $region31: #{tpu_custom_call.1} parent=15 // pred_region
          %p216 = scmp.lt.s32.totalorder %s23, 3
          %s217 = scalar_select %p216, %s23, 3
          %s218 = scalar_lea.vmem %s3, %s217
        $region32: #{tpu_custom_call.1} parent=15 // pred_fallthru
          _
      $region16: #{tpu_custom_call.1} parent=5 // pred_fallthru
        _
      %p219 = scmp.le.s32.totalorder 1, %s16
      %p220 = scmp.lt.s32.totalorder %s16, 9
      %p221 = pnand %p219, %p220
      %p222 = pneg %p221
      // Predicated region
      $region33: #{tpu_custom_call.1} parent=5 // pred_check
        _
      $region34: #{tpu_custom_call.1} parent=5 // pred_check_branch
        %224 = sbr.rel (%p221) target = $region36
      $region35: #{tpu_custom_call.1} parent=5 // pred_region
        %s225 = ssub.s32 %s16, 1
        %s226 = sand.u32 %s67, 1
        %s227 = scalar_lea.sflag [#allocation3], %s226
        %s228 = sand.u32 %s67, 1
        %s229 = smul.addr %s228, 144
        %s230 = scalar_lea.vmem [#allocation2], %s229
        // Predicated region
        $region37: #{tpu_custom_call.1} parent=35 // pred_check
          %p231 = pneg %p80
        $region38: #{tpu_custom_call.1} parent=35 // pred_check_branch
          %233 = sbr.rel (%p231) target = $region40
        $region39: #{tpu_custom_call.1} parent=35 // pred_region
          %234 = dma.done %s227, 2304
        $region40: #{tpu_custom_call.1} parent=35 // pred_fallthru
          _
        %p235 = scmp.lt.s32.totalorder %s26, 1
        %s236 = scalar_select %p235, %s26, 1
        %s237 = smul.addr %s236, 6
        %s238 = smul.addr %s237, 4
        %s239 = scalar_lea.vmem %s0, %s238
        %p240 = pneg %p54
        %p241 = pneg %p51
        %s242 = sand.u32 %s67, 1
        %s243 = scalar_lea.sflag [#allocation3], %s242
        %s244 = sand.u32 %s67, 1
        %s245 = smul.addr %s244, 144
        %s246 = scalar_lea.vmem [#allocation2], %s245
        %p247 = pneg %p80
        %p248 = pneg %p77
        %p249 = scmp.lt.s32.totalorder %s25, 3
        %s250 = scalar_select %p249, %s25, 3
        %s251 = scalar_lea.vmem %s2, %s250
        %p252 = pneg %p106
        %p253 = pneg %p103
        %p254 = scmp.lt.s32.totalorder %s25, 3
        %s255 = scalar_select %p254, %s25, 3
        %s256 = scalar_lea.vmem %s3, %s255
        %p257 = pneg %p132
        %p258 = pneg %p129
        %p259 = pneg %p160
        %p260 = pneg %p157
        %s261 = sand.u32 %s147, 1
        %s262 = scalar_lea.sflag [#allocation4], %s261
        %s263 = sand.u32 %s147, 1
        %s264 = smul.addr %s263, 24
        %s265 = scalar_lea.vmem [#allocation5], %s264
        %p266 = scmp.lt.s32.totalorder %s26, 1
        %s267 = scalar_select %p266, %s26, 1
        %s268 = smul.addr %s267, 6
        %s269 = smul.addr %s268, 4
        %s270 = scalar_lea.vmem %s0, %s269
        %p271 = scmp.lt.s32.totalorder %s25, 3
        %s272 = scalar_select %p271, %s25, 3
        %s273 = scalar_lea.vmem %s2, %s272
        %p274 = scmp.lt.s32.totalorder %s25, 3
        %s275 = scalar_select %p274, %s25, 3
        %s276 = scalar_lea.vmem %s3, %s275
        %v278 = vld [vmem:[%s270] sm:$0xf]
        %v279 = vld [vmem:[%s270 + $0x4] sm:$0xf]
        %v280 = vld [vmem:[%s270 + $0x8] sm:$0xf]
        %v281 = vld [vmem:[%s230] sm:$0xf]
        %v282 = vld [vmem:[%s230 + $0x4] sm:$0xf]
        %v283 = vld [vmem:[%s230 + $0x8] sm:$0xf]
        %v284 = vld [vmem:[%s230 + $0xc] sm:$0xf]
        %v285 = vld [vmem:[%s270 + $0xc] sm:$0x1]
        %s286 = scalar_lea.vmem %s230, 16 [#allocation2]
        %v287 = vld [vmem:[%s286] sm:$0xf]
        %v288 = vld [vmem:[%s286 + $0x4] sm:$0xf]
        %v289 = vld [vmem:[%s286 + $0x8] sm:$0xf]
        %v290 = vld [vmem:[%s286 + $0xc] sm:$0xf]
        %v295 = vunpack.c.l.b16 %v278
        %v296 = vunpack.c.l.b16 %v279
        %v297 = vunpack.c.l.b16 %v280
        %v298 = vunpack.c.l.b16 %v285
        %v299 = vpack.c.b16 %v296, %v295
        %v300 = vpack.c.b16 %v298, %v297
        %vm301 = vsmask.f32 7424
        %v303 = vshrl.u32 %v299, 16
        %v305 = vshll.u32 %v299, 16
        %v307 = vrot.slane %v305, 1
        %v308 = vor.u32 %v303, %v307
        %v310 = vshll.u32 %v300, 16
        %v312 = vrot.slane %v310, 1
        %v313 = vsel %vm301, %v308, %v312
        %v314 = vshrl.u32 %v300, 16
        %v316 = vor.u32 %v314, %v312
        %v321 = vunpack.c.l.b16 %v287
        %v322 = vunpack.c.l.b16 %v288
        %v323 = vunpack.c.l.b16 %v289
        %v324 = vunpack.c.l.b16 %v290
        %v325 = vpack.c.b16 %v322, %v321
        %v326 = vpack.c.b16 %v324, %v323
        %vm329 = vcmask 261120
        %v331 = vsel %vm329, %v313, 0
        %v334 = vsel %vm329, %v316, 0
        %336 = vmatprep.subr.bf16.mxu0 0
        %337 = vmatpush1.bf16.msra.mxu0 %v325
        %338 = vmatprep.subr.bf16.mxu0 0
        %339 = vmatpush1.bf16.msra.mxu0 %v326
        %340 = vmatprep.subr.bf16.mxu0 0
        %341 = vmatpush1.bf16.msra.mxu0 0
        %342 = vmatprep.subr.bf16.mxu0 0
        %343 = vmatpush1.bf16.msra.mxu0 0
        %344 = vmatprep.subr.bf16.mxu0 0
        %345 = vmatpush1.bf16.msra.mxu0 0
        %346 = vmatprep.subr.bf16.mxu0 0
        %347 = vmatpush1.bf16.msra.mxu0 0
        %348 = vmatprep.subr.bf16.mxu0 0
        %349 = vmatpush1.bf16.msra.mxu0 0
        %350 = vmatprep.subr.bf16.mxu0 0
        %351 = vmatpush1.bf16.msra.mxu0 0
        %352 = vmatprep.subr.bf16.mxu0 0
        %353 = vmatpush1.bf16.msra.mxu0 0
        %354 = vmatprep.subr.bf16.mxu0 0
        %355 = vmatpush1.bf16.msra.mxu0 0
        %356 = vmatprep.subr.bf16.mxu0 0
        %357 = vmatpush1.bf16.msra.mxu0 0
        %358 = vmatprep.subr.bf16.mxu0 0
        %359 = vmatpush1.bf16.msra.mxu0 0
        %360 = vmatprep.subr.bf16.mxu0 0
        %361 = vmatpush1.bf16.msra.mxu0 0
        %362 = vmatprep.subr.bf16.mxu0 0
        %363 = vmatpush1.bf16.msra.mxu0 0
        %364 = vmatprep.subr.bf16.mxu0 0
        %365 = vmatpush1.bf16.msra.mxu0 0
        %366 = vmatprep.subr.bf16.mxu0 0
        %367 = vmatpush1.bf16.msra.mxu0 0
        %368 = vmatprep.mubr.bf16.mxu0 0
        %369 = vmatmul.mubr.bf16.gmra.mrb[0].mxu0 %v331
        %v370 = vpop.f32.mrb[0].mxu0
        %v371 = vadd.f32 0.0, %v370
        %v372 = vpop.f32.mrb[0].mxu0
        %v373 = vpop.f32.mrb[0].mxu0
        %v374 = vadd.f32 0.0, %v373
        %v375 = vpop.f32.mrb[0].mxu0
        %376 = vmatprep.mubr.bf16.mxu0 0
        %377 = vmatmul.mubr.bf16.gmra.mrb[0].mxu0 %v334
        %v378 = vpop.f32.mrb[0].mxu0
        %v379 = vadd.f32 0.0, %v378
        %v380 = vpop.f32.mrb[0].mxu0
        %v381 = vpop.f32.mrb[0].mxu0
        %v382 = vpop.f32.mrb[0].mxu0
        %383 = vdwg.mxu0
        %v384 = vpack.c.b16 %v297, %v297
        %v389 = vunpack.c.l.b16 %v281
        %v390 = vunpack.c.l.b16 %v282
        %v391 = vunpack.c.l.b16 %v283
        %v392 = vunpack.c.l.b16 %v284
        %v393 = vpack.c.b16 %v390, %v389
        %v394 = vpack.c.b16 %v392, %v391
        %v397 = vsel %vm329, %v299, 0
        %v400 = vsel %vm329, %v384, 0
        %402 = vmatprep.subr.bf16.mxu0 0
        %403 = vmatpush1.bf16.msra.mxu0 %v393
        %404 = vmatprep.subr.bf16.mxu0 0
        %405 = vmatpush1.bf16.msra.mxu0 %v394
        %406 = vmatprep.subr.bf16.mxu0 0
        %407 = vmatpush1.bf16.msra.mxu0 0
        %408 = vmatprep.subr.bf16.mxu0 0
        %409 = vmatpush1.bf16.msra.mxu0 0
        %410 = vmatprep.subr.bf16.mxu0 0
        %411 = vmatpush1.bf16.msra.mxu0 0
        %412 = vmatprep.subr.bf16.mxu0 0
        %413 = vmatpush1.bf16.msra.mxu0 0
        %414 = vmatprep.subr.bf16.mxu0 0
        %415 = vmatpush1.bf16.msra.mxu0 0
        %416 = vmatprep.subr.bf16.mxu0 0
        %417 = vmatpush1.bf16.msra.mxu0 0
        %418 = vmatprep.subr.bf16.mxu0 0
        %419 = vmatpush1.bf16.msra.mxu0 0
        %420 = vmatprep.subr.bf16.mxu0 0
        %421 = vmatpush1.bf16.msra.mxu0 0
        %422 = vmatprep.subr.bf16.mxu0 0
        %423 = vmatpush1.bf16.msra.mxu0 0
        %424 = vmatprep.subr.bf16.mxu0 0
        %425 = vmatpush1.bf16.msra.mxu0 0
        %426 = vmatprep.subr.bf16.mxu0 0
        %427 = vmatpush1.bf16.msra.mxu0 0
        %428 = vmatprep.subr.bf16.mxu0 0
        %429 = vmatpush1.bf16.msra.mxu0 0
        %430 = vmatprep.subr.bf16.mxu0 0
        %431 = vmatpush1.bf16.msra.mxu0 0
        %432 = vmatprep.subr.bf16.mxu0 0
        %433 = vmatpush1.bf16.msra.mxu0 0
        %434 = vmatprep.mubr.bf16.mxu0 0
        %435 = vmatmul.mubr.bf16.gmra.mrb[0].mxu0 %v397
        %v436 = vpop.f32.mrb[0].mxu0
        %v437 = vadd.f32 %v371, %v436
        %v438 = vpop.f32.mrb[0].mxu0
        %v439 = vpop.f32.mrb[0].mxu0
        %v440 = vadd.f32 %v374, %v439
        %v441 = vpop.f32.mrb[0].mxu0
        %442 = vmatprep.mubr.bf16.mxu0 0
        %443 = vmatmul.mubr.bf16.gmra.mrb[0].mxu0 %v400
        %v444 = vpop.f32.mrb[0].mxu0
        %v445 = vadd.f32 %v379, %v444
        %v446 = vpop.f32.mrb[0].mxu0
        %v447 = vpop.f32.mrb[0].mxu0
        %v448 = vpop.f32.mrb[0].mxu0
        %449 = vdwg.mxu0
        %v450 = vld [vmem:[%s270] sm:$0xe]
        %s451 = scalar_lea.vmem %s230, 32 [#allocation2]
        %v452 = vld [vmem:[%s451] sm:$0xf]
        %v453 = vld [vmem:[%s451 + $0x4] sm:$0xf]
        %v454 = vld [vmem:[%s451 + $0x8] sm:$0xf]
        %v455 = vld [vmem:[%s451 + $0xc] sm:$0xf]
        %v457 = vunpack.c.l.b16 %v450
        %v458 = vpack.c.b16 %v296, %v457
        %vm459 = vcmask 1046528
        %v460 = vrot.slane %v458, 1
        %v461 = vrot.slane %v300, 1
        %v462 = vsel %vm459, %v460, %v461
        %v467 = vunpack.c.l.b16 %v452
        %v468 = vunpack.c.l.b16 %v453
        %v469 = vunpack.c.l.b16 %v454
        %v470 = vunpack.c.l.b16 %v455
        %v471 = vpack.c.b16 %v468, %v467
        %v472 = vpack.c.b16 %v470, %v469
        %v476 = vsel %vm329, %v462, 0
        %v479 = vsel %vm329, %v461, 0
        %481 = vmatprep.subr.bf16.mxu0 0
        %482 = vmatpush1.bf16.msra.mxu0 %v471
        %483 = vmatprep.subr.bf16.mxu0 0
        %484 = vmatpush1.bf16.msra.mxu0 %v472
        %485 = vmatprep.subr.bf16.mxu0 0
        %486 = vmatpush1.bf16.msra.mxu0 0
        %487 = vmatprep.subr.bf16.mxu0 0
        %488 = vmatpush1.bf16.msra.mxu0 0
        %489 = vmatprep.subr.bf16.mxu0 0
        %490 = vmatpush1.bf16.msra.mxu0 0
        %491 = vmatprep.subr.bf16.mxu0 0
        %492 = vmatpush1.bf16.msra.mxu0 0
        %493 = vmatprep.subr.bf16.mxu0 0
        %494 = vmatpush1.bf16.msra.mxu0 0
        %495 = vmatprep.subr.bf16.mxu0 0
        %496 = vmatpush1.bf16.msra.mxu0 0
        %497 = vmatprep.subr.bf16.mxu0 0
        %498 = vmatpush1.bf16.msra.mxu0 0
        %499 = vmatprep.subr.bf16.mxu0 0
        %500 = vmatpush1.bf16.msra.mxu0 0
        %501 = vmatprep.subr.bf16.mxu0 0
        %502 = vmatpush1.bf16.msra.mxu0 0
        %503 = vmatprep.subr.bf16.mxu0 0
        %504 = vmatpush1.bf16.msra.mxu0 0
        %505 = vmatprep.subr.bf16.mxu0 0
        %506 = vmatpush1.bf16.msra.mxu0 0
        %507 = vmatprep.subr.bf16.mxu0 0
        %508 = vmatpush1.bf16.msra.mxu0 0
        %509 = vmatprep.subr.bf16.mxu0 0
        %510 = vmatpush1.bf16.msra.mxu0 0
        %511 = vmatprep.subr.bf16.mxu0 0
        %512 = vmatpush1.bf16.msra.mxu0 0
        %513 = vmatprep.mubr.bf16.mxu0 0
        %514 = vmatmul.mubr.bf16.gmra.mrb[0].mxu0 %v476
        %v515 = vpop.f32.mrb[0].mxu0
        %v516 = vadd.f32 0.0, %v515
        %v517 = vpop.f32.mrb[0].mxu0
        %v518 = vpop.f32.mrb[0].mxu0
        %v519 = vadd.f32 0.0, %v518
        %v520 = vpop.f32.mrb[0].mxu0
        %521 = vmatprep.mubr.bf16.mxu0 0
        %522 = vmatmul.mubr.bf16.gmra.mrb[0].mxu0 %v479
        %v523 = vpop.f32.mrb[0].mxu0
        %v524 = vadd.f32 0.0, %v523
        %v525 = vpop.f32.mrb[0].mxu0
        %v526 = vpop.f32.mrb[0].mxu0
        %v527 = vpop.f32.mrb[0].mxu0
        %528 = vdwg.mxu0
        %v529 = vadd.f32 %v437, %v516
        %v530 = vadd.f32 %v440, %v519
        %v531 = vadd.f32 %v445, %v524
        %v532 = vld [vmem:[%s270] sm:$0x8]
        %v533 = vld [vmem:[%s270 + $0xc] sm:$0x7]
        %s534 = scalar_lea.vmem %s230, 48 [#allocation2]
        %v535 = vld [vmem:[%s534] sm:$0xf]
        %v536 = vld [vmem:[%s534 + $0x4] sm:$0xf]
        %v537 = vld [vmem:[%s534 + $0x8] sm:$0xf]
        %v538 = vld [vmem:[%s534 + $0xc] sm:$0xf]
        %v541 = vunpack.c.l.b16 %v532
        %v542 = vunpack.c.l.b16 %v533
        %v543 = vpack.c.b16 %v296, %v541
        %v544 = vpack.c.b16 %v542, %v297
        %vm545 = vcmask 1044480
        %v546 = vrot.slane %v543, 3
        %v547 = vrot.slane %v544, 3
        %v548 = vsel %vm545, %v546, %v547
        %v553 = vunpack.c.l.b16 %v535
        %v554 = vunpack.c.l.b16 %v536
        %v555 = vunpack.c.l.b16 %v537
        %v556 = vunpack.c.l.b16 %v538
        %v557 = vpack.c.b16 %v554, %v553
        %v558 = vpack.c.b16 %v556, %v555
        %v562 = vsel %vm329, %v548, 0
        %v565 = vsel %vm329, %v547, 0
        %567 = vmatprep.subr.bf16.mxu0 0
        %568 = vmatpush1.bf16.msra.mxu0 %v557
        %569 = vmatprep.subr.bf16.mxu0 0
        %570 = vmatpush1.bf16.msra.mxu0 %v558
        %571 = vmatprep.subr.bf16.mxu0 0
        %572 = vmatpush1.bf16.msra.mxu0 0
        %573 = vmatprep.subr.bf16.mxu0 0
        %574 = vmatpush1.bf16.msra.mxu0 0
        %575 = vmatprep.subr.bf16.mxu0 0
        %576 = vmatpush1.bf16.msra.mxu0 0
        %577 = vmatprep.subr.bf16.mxu0 0
        %578 = vmatpush1.bf16.msra.mxu0 0
        %579 = vmatprep.subr.bf16.mxu0 0
        %580 = vmatpush1.bf16.msra.mxu0 0
        %581 = vmatprep.subr.bf16.mxu0 0
        %582 = vmatpush1.bf16.msra.mxu0 0
        %583 = vmatprep.subr.bf16.mxu0 0
        %584 = vmatpush1.bf16.msra.mxu0 0
        %585 = vmatprep.subr.bf16.mxu0 0
        %586 = vmatpush1.bf16.msra.mxu0 0
        %587 = vmatprep.subr.bf16.mxu0 0
        %588 = vmatpush1.bf16.msra.mxu0 0
        %589 = vmatprep.subr.bf16.mxu0 0
        %590 = vmatpush1.bf16.msra.mxu0 0
        %591 = vmatprep.subr.bf16.mxu0 0
        %592 = vmatpush1.bf16.msra.mxu0 0
        %593 = vmatprep.subr.bf16.mxu0 0
        %594 = vmatpush1.bf16.msra.mxu0 0
        %595 = vmatprep.subr.bf16.mxu0 0
        %596 = vmatpush1.bf16.msra.mxu0 0
        %597 = vmatprep.subr.bf16.mxu0 0
        %598 = vmatpush1.bf16.msra.mxu0 0
        %599 = vmatprep.mubr.bf16.mxu0 0
        %600 = vmatmul.mubr.bf16.gmra.mrb[0].mxu0 %v562
        %v601 = vpop.f32.mrb[0].mxu0
        %v602 = vadd.f32 0.0, %v601
        %v603 = vpop.f32.mrb[0].mxu0
        %v604 = vpop.f32.mrb[0].mxu0
        %v605 = vadd.f32 0.0, %v604
        %v606 = vpop.f32.mrb[0].mxu0
        %607 = vmatprep.mubr.bf16.mxu0 0
        %608 = vmatmul.mubr.bf16.gmra.mrb[0].mxu0 %v565
        %v609 = vpop.f32.mrb[0].mxu0
        %v610 = vadd.f32 0.0, %v609
        %v611 = vpop.f32.mrb[0].mxu0
        %v612 = vpop.f32.mrb[0].mxu0
        %v613 = vpop.f32.mrb[0].mxu0
        %614 = vdwg.mxu0
        %v615 = vadd.f32 %v529, %v602
        %v616 = vadd.f32 %v530, %v605
        %v617 = vadd.f32 %v531, %v610
        %v618 = vld [vmem:[%s270 + $0xc] sm:$0xf]
        %s619 = scalar_lea.vmem %s230, 64 [#allocation2]
        %v620 = vld [vmem:[%s619] sm:$0xf]
        %v621 = vld [vmem:[%s619 + $0x4] sm:$0xf]
        %v622 = vld [vmem:[%s619 + $0x8] sm:$0xf]
        %v623 = vld [vmem:[%s619 + $0xc] sm:$0xf]
        %v625 = vunpack.c.l.b16 %v618
        %v626 = vpack.c.b16 %v625, %v297
        %vm627 = vsmask.f32 4352
        %v629 = vshrl.u32 %v543, 16
        %v631 = vrot.slane %v629, 3
        %v632 = vshll.u32 %v543, 16
        %v634 = vrot.slane %v632, 4
        %v635 = vor.u32 %v631, %v634
        %v637 = vshrl.u32 %v626, 16
        %v639 = vrot.slane %v637, 3
        %v640 = vshll.u32 %v626, 16
        %v642 = vrot.slane %v640, 4
        %v643 = vor.u32 %v639, %v642
        %v644 = vsel %vm627, %v635, %v643
        %v649 = vunpack.c.l.b16 %v620
        %v650 = vunpack.c.l.b16 %v621
        %v651 = vunpack.c.l.b16 %v622
        %v652 = vunpack.c.l.b16 %v623
        %v653 = vpack.c.b16 %v650, %v649
        %v654 = vpack.c.b16 %v652, %v651
        %v658 = vsel %vm329, %v644, 0
        %v661 = vsel %vm329, %v643, 0
        %663 = vmatprep.subr.bf16.mxu0 0
        %664 = vmatpush1.bf16.msra.mxu0 %v653
        %665 = vmatprep.subr.bf16.mxu0 0
        %666 = vmatpush1.bf16.msra.mxu0 %v654
        %667 = vmatprep.subr.bf16.mxu0 0
        %668 = vmatpush1.bf16.msra.mxu0 0
        %669 = vmatprep.subr.bf16.mxu0 0
        %670 = vmatpush1.bf16.msra.mxu0 0
        %671 = vmatprep.subr.bf16.mxu0 0
        %672 = vmatpush1.bf16.msra.mxu0 0
        %673 = vmatprep.subr.bf16.mxu0 0
        %674 = vmatpush1.bf16.msra.mxu0 0
        %675 = vmatprep.subr.bf16.mxu0 0
        %676 = vmatpush1.bf16.msra.mxu0 0
        %677 = vmatprep.subr.bf16.mxu0 0
        %678 = vmatpush1.bf16.msra.mxu0 0
        %679 = vmatprep.subr.bf16.mxu0 0
        %680 = vmatpush1.bf16.msra.mxu0 0
        %681 = vmatprep.subr.bf16.mxu0 0
        %682 = vmatpush1.bf16.msra.mxu0 0
        %683 = vmatprep.subr.bf16.mxu0 0
        %684 = vmatpush1.bf16.msra.mxu0 0
        %685 = vmatprep.subr.bf16.mxu0 0
        %686 = vmatpush1.bf16.msra.mxu0 0
        %687 = vmatprep.subr.bf16.mxu0 0
        %688 = vmatpush1.bf16.msra.mxu0 0
        %689 = vmatprep.subr.bf16.mxu0 0
        %690 = vmatpush1.bf16.msra.mxu0 0
        %691 = vmatprep.subr.bf16.mxu0 0
        %692 = vmatpush1.bf16.msra.mxu0 0
        %693 = vmatprep.subr.bf16.mxu0 0
        %694 = vmatpush1.bf16.msra.mxu0 0
        %695 = vmatprep.mubr.bf16.mxu0 0
        %696 = vmatmul.mubr.bf16.gmra.mrb[0].mxu0 %v658
        %v697 = vpop.f32.mrb[0].mxu0
        %v698 = vadd.f32 0.0, %v697
        %v699 = vpop.f32.mrb[0].mxu0
        %v700 = vpop.f32.mrb[0].mxu0
        %v701 = vadd.f32 0.0, %v700
        %v702 = vpop.f32.mrb[0].mxu0
        %703 = vmatprep.mubr.bf16.mxu0 0
        %704 = vmatmul.mubr.bf16.gmra.mrb[0].mxu0 %v661
        %v705 = vpop.f32.mrb[0].mxu0
        %v706 = vadd.f32 0.0, %v705
        %v707 = vpop.f32.mrb[0].mxu0
        %v708 = vpop.f32.mrb[0].mxu0
        %v709 = vpop.f32.mrb[0].mxu0
        %710 = vdwg.mxu0
        %v711 = vadd.f32 %v615, %v698
        %v712 = vadd.f32 %v616, %v701
        %v713 = vadd.f32 %v617, %v706
        %s714 = scalar_lea.vmem %s230, 80 [#allocation2]
        %v715 = vld [vmem:[%s714] sm:$0xf]
        %v716 = vld [vmem:[%s714 + $0x4] sm:$0xf]
        %v717 = vld [vmem:[%s714 + $0x8] sm:$0xf]
        %v718 = vld [vmem:[%s714 + $0xc] sm:$0xf]
        %v719 = vpack.c.b16 %v297, %v296
        %v720 = vpack.c.b16 %v625, %v625
        %v725 = vunpack.c.l.b16 %v715
        %v726 = vunpack.c.l.b16 %v716
        %v727 = vunpack.c.l.b16 %v717
        %v728 = vunpack.c.l.b16 %v718
        %v729 = vpack.c.b16 %v726, %v725
        %v730 = vpack.c.b16 %v728, %v727
        %v734 = vsel %vm329, %v719, 0
        %v737 = vsel %vm329, %v720, 0
        %739 = vmatprep.subr.bf16.mxu0 0
        %740 = vmatpush1.bf16.msra.mxu0 %v729
        %741 = vmatprep.subr.bf16.mxu0 0
        %742 = vmatpush1.bf16.msra.mxu0 %v730
        %743 = vmatprep.subr.bf16.mxu0 0
        %744 = vmatpush1.bf16.msra.mxu0 0
        %745 = vmatprep.subr.bf16.mxu0 0
        %746 = vmatpush1.bf16.msra.mxu0 0
        %747 = vmatprep.subr.bf16.mxu0 0
        %748 = vmatpush1.bf16.msra.mxu0 0
        %749 = vmatprep.subr.bf16.mxu0 0
        %750 = vmatpush1.bf16.msra.mxu0 0
        %751 = vmatprep.subr.bf16.mxu0 0
        %752 = vmatpush1.bf16.msra.mxu0 0
        %753 = vmatprep.subr.bf16.mxu0 0
        %754 = vmatpush1.bf16.msra.mxu0 0
        %755 = vmatprep.subr.bf16.mxu0 0
        %756 = vmatpush1.bf16.msra.mxu0 0
        %757 = vmatprep.subr.bf16.mxu0 0
        %758 = vmatpush1.bf16.msra.mxu0 0
        %759 = vmatprep.subr.bf16.mxu0 0
        %760 = vmatpush1.bf16.msra.mxu0 0
        %761 = vmatprep.subr.bf16.mxu0 0
        %762 = vmatpush1.bf16.msra.mxu0 0
        %763 = vmatprep.subr.bf16.mxu0 0
        %764 = vmatpush1.bf16.msra.mxu0 0
        %765 = vmatprep.subr.bf16.mxu0 0
        %766 = vmatpush1.bf16.msra.mxu0 0
        %767 = vmatprep.subr.bf16.mxu0 0
        %768 = vmatpush1.bf16.msra.mxu0 0
        %769 = vmatprep.subr.bf16.mxu0 0
        %770 = vmatpush1.bf16.msra.mxu0 0
        %771 = vmatprep.mubr.bf16.mxu0 0
        %772 = vmatmul.mubr.bf16.gmra.mrb[0].mxu0 %v734
        %v773 = vpop.f32.mrb[0].mxu0
        %v774 = vadd.f32 0.0, %v773
        %v775 = vpop.f32.mrb[0].mxu0
        %v776 = vpop.f32.mrb[0].mxu0
        %v777 = vadd.f32 0.0, %v776
        %v778 = vpop.f32.mrb[0].mxu0
        %779 = vmatprep.mubr.bf16.mxu0 0
        %780 = vmatmul.mubr.bf16.gmra.mrb[0].mxu0 %v737
        %v781 = vpop.f32.mrb[0].mxu0
        %v782 = vadd.f32 0.0, %v781
        %v783 = vpop.f32.mrb[0].mxu0
        %v784 = vpop.f32.mrb[0].mxu0
        %v785 = vpop.f32.mrb[0].mxu0
        %786 = vdwg.mxu0
        %v787 = vadd.f32 %v711, %v774
        %v788 = vadd.f32 %v712, %v777
        %v789 = vadd.f32 %v713, %v782
        %v790 = vld [vmem:[%s270 + $0x4] sm:$0xc]
        %v791 = vld [vmem:[%s270 + $0x8] sm:$0xf]
        %v792 = vld [vmem:[%s270 + $0xc] sm:$0xf]
        %v793 = vld [vmem:[%s270 + $0x10] sm:$0x3]
        %s794 = scalar_lea.vmem %s230, 96 [#allocation2]
        %v795 = vld [vmem:[%s794] sm:$0xf]
        %v796 = vld [vmem:[%s794 + $0x4] sm:$0xf]
        %v797 = vld [vmem:[%s794 + $0x8] sm:$0xf]
        %v798 = vld [vmem:[%s794 + $0xc] sm:$0xf]
        %v803 = vunpack.c.l.b16 %v790
        %v804 = vunpack.c.l.b16 %v791
        %v805 = vunpack.c.l.b16 %v792
        %v806 = vunpack.c.l.b16 %v793
        %v807 = vpack.c.b16 %v804, %v803
        %v808 = vpack.c.b16 %v806, %v805
        %vm809 = vcmask 1045504
        %v810 = vrot.slane %v807, 2
        %v811 = vrot.slane %v808, 2
        %v812 = vsel %vm809, %v810, %v811
        %v817 = vunpack.c.l.b16 %v795
        %v818 = vunpack.c.l.b16 %v796
        %v819 = vunpack.c.l.b16 %v797
        %v820 = vunpack.c.l.b16 %v798
        %v821 = vpack.c.b16 %v818, %v817
        %v822 = vpack.c.b16 %v820, %v819
        %v826 = vsel %vm329, %v812, 0
        %v829 = vsel %vm329, %v811, 0
        %831 = vmatprep.subr.bf16.mxu0 0
        %832 = vmatpush1.bf16.msra.mxu0 %v821
        %833 = vmatprep.subr.bf16.mxu0 0
        %834 = vmatpush1.bf16.msra.mxu0 %v822
        %835 = vmatprep.subr.bf16.mxu0 0
        %836 = vmatpush1.bf16.msra.mxu0 0
        %837 = vmatprep.subr.bf16.mxu0 0
        %838 = vmatpush1.bf16.msra.mxu0 0
        %839 = vmatprep.subr.bf16.mxu0 0
        %840 = vmatpush1.bf16.msra.mxu0 0
        %841 = vmatprep.subr.bf16.mxu0 0
        %842 = vmatpush1.bf16.msra.mxu0 0
        %843 = vmatprep.subr.bf16.mxu0 0
        %844 = vmatpush1.bf16.msra.mxu0 0
        %845 = vmatprep.subr.bf16.mxu0 0
        %846 = vmatpush1.bf16.msra.mxu0 0
        %847 = vmatprep.subr.bf16.mxu0 0
        %848 = vmatpush1.bf16.msra.mxu0 0
        %849 = vmatprep.subr.bf16.mxu0 0
        %850 = vmatpush1.bf16.msra.mxu0 0
        %851 = vmatprep.subr.bf16.mxu0 0
        %852 = vmatpush1.bf16.msra.mxu0 0
        %853 = vmatprep.subr.bf16.mxu0 0
        %854 = vmatpush1.bf16.msra.mxu0 0
        %855 = vmatprep.subr.bf16.mxu0 0
        %856 = vmatpush1.bf16.msra.mxu0 0
        %857 = vmatprep.subr.bf16.mxu0 0
        %858 = vmatpush1.bf16.msra.mxu0 0
        %859 = vmatprep.subr.bf16.mxu0 0
        %860 = vmatpush1.bf16.msra.mxu0 0
        %861 = vmatprep.subr.bf16.mxu0 0
        %862 = vmatpush1.bf16.msra.mxu0 0
        %863 = vmatprep.mubr.bf16.mxu0 0
        %864 = vmatmul.mubr.bf16.gmra.mrb[0].mxu0 %v826
        %v865 = vpop.f32.mrb[0].mxu0
        %v866 = vadd.f32 0.0, %v865
        %v867 = vpop.f32.mrb[0].mxu0
        %v868 = vpop.f32.mrb[0].mxu0
        %v869 = vadd.f32 0.0, %v868
        %v870 = vpop.f32.mrb[0].mxu0
        %871 = vmatprep.mubr.bf16.mxu0 0
        %872 = vmatmul.mubr.bf16.gmra.mrb[0].mxu0 %v829
        %v873 = vpop.f32.mrb[0].mxu0
        %v874 = vadd.f32 0.0, %v873
        %v875 = vpop.f32.mrb[0].mxu0
        %v876 = vpop.f32.mrb[0].mxu0
        %v877 = vpop.f32.mrb[0].mxu0
        %878 = vdwg.mxu0
        %v879 = vadd.f32 %v787, %v866
        %v880 = vadd.f32 %v788, %v869
        %v881 = vadd.f32 %v789, %v874
        %v882 = vld [vmem:[%s270 + $0x10] sm:$0x7]
        %s883 = scalar_lea.vmem %s230, 112 [#allocation2]
        %v884 = vld [vmem:[%s883] sm:$0xf]
        %v885 = vld [vmem:[%s883 + $0x4] sm:$0xf]
        %v886 = vld [vmem:[%s883 + $0x8] sm:$0xf]
        %v887 = vld [vmem:[%s883 + $0xc] sm:$0xf]
        %v889 = vunpack.c.l.b16 %v882
        %v890 = vpack.c.b16 %v889, %v805
        %vm891 = vsmask.f32 5376
        %v893 = vshrl.u32 %v807, 16
        %v895 = vrot.slane %v893, 2
        %v896 = vshll.u32 %v807, 16
        %v898 = vrot.slane %v896, 3
        %v899 = vor.u32 %v895, %v898
        %v901 = vshrl.u32 %v890, 16
        %v903 = vrot.slane %v901, 2
        %v904 = vshll.u32 %v890, 16
        %v906 = vrot.slane %v904, 3
        %v907 = vor.u32 %v903, %v906
        %v908 = vsel %vm891, %v899, %v907
        %v913 = vunpack.c.l.b16 %v884
        %v914 = vunpack.c.l.b16 %v885
        %v915 = vunpack.c.l.b16 %v886
        %v916 = vunpack.c.l.b16 %v887
        %v917 = vpack.c.b16 %v914, %v913
        %v918 = vpack.c.b16 %v916, %v915
        %v922 = vsel %vm329, %v908, 0
        %v925 = vsel %vm329, %v907, 0
        %927 = vmatprep.subr.bf16.mxu0 0
        %928 = vmatpush1.bf16.msra.mxu0 %v917
        %929 = vmatprep.subr.bf16.mxu0 0
        %930 = vmatpush1.bf16.msra.mxu0 %v918
        %931 = vmatprep.subr.bf16.mxu0 0
        %932 = vmatpush1.bf16.msra.mxu0 0
        %933 = vmatprep.subr.bf16.mxu0 0
        %934 = vmatpush1.bf16.msra.mxu0 0
        %935 = vmatprep.subr.bf16.mxu0 0
        %936 = vmatpush1.bf16.msra.mxu0 0
        %937 = vmatprep.subr.bf16.mxu0 0
        %938 = vmatpush1.bf16.msra.mxu0 0
        %939 = vmatprep.subr.bf16.mxu0 0
        %940 = vmatpush1.bf16.msra.mxu0 0
        %941 = vmatprep.subr.bf16.mxu0 0
        %942 = vmatpush1.bf16.msra.mxu0 0
        %943 = vmatprep.subr.bf16.mxu0 0
        %944 = vmatpush1.bf16.msra.mxu0 0
        %945 = vmatprep.subr.bf16.mxu0 0
        %946 = vmatpush1.bf16.msra.mxu0 0
        %947 = vmatprep.subr.bf16.mxu0 0
        %948 = vmatpush1.bf16.msra.mxu0 0
        %949 = vmatprep.subr.bf16.mxu0 0
        %950 = vmatpush1.bf16.msra.mxu0 0
        %951 = vmatprep.subr.bf16.mxu0 0
        %952 = vmatpush1.bf16.msra.mxu0 0
        %953 = vmatprep.subr.bf16.mxu0 0
        %954 = vmatpush1.bf16.msra.mxu0 0
        %955 = vmatprep.subr.bf16.mxu0 0
        %956 = vmatpush1.bf16.msra.mxu0 0
        %957 = vmatprep.subr.bf16.mxu0 0
        %958 = vmatpush1.bf16.msra.mxu0 0
        %959 = vmatprep.mubr.bf16.mxu0 0
        %960 = vmatmul.mubr.bf16.gmra.mrb[0].mxu0 %v922
        %v961 = vpop.f32.mrb[0].mxu0
        %v962 = vadd.f32 0.0, %v961
        %v963 = vpop.f32.mrb[0].mxu0
        %v964 = vpop.f32.mrb[0].mxu0
        %v965 = vadd.f32 0.0, %v964
        %v966 = vpop.f32.mrb[0].mxu0
        %967 = vmatprep.mubr.bf16.mxu0 0
        %968 = vmatmul.mubr.bf16.gmra.mrb[0].mxu0 %v925
        %v969 = vpop.f32.mrb[0].mxu0
        %v970 = vadd.f32 0.0, %v969
        %v971 = vpop.f32.mrb[0].mxu0
        %v972 = vpop.f32.mrb[0].mxu0
        %v973 = vpop.f32.mrb[0].mxu0
        %974 = vdwg.mxu0
        %v975 = vadd.f32 %v879, %v962
        %v976 = vadd.f32 %v880, %v965
        %v977 = vadd.f32 %v881, %v970
        %v978 = vld [vmem:[%s270 + $0x4] sm:$0x8]
        %s979 = scalar_lea.vmem %s230, 128 [#allocation2]
        %v980 = vld [vmem:[%s979] sm:$0xf]
        %v981 = vld [vmem:[%s979 + $0x4] sm:$0xf]
        %v982 = vld [vmem:[%s979 + $0x8] sm:$0xf]
        %v983 = vld [vmem:[%s979 + $0xc] sm:$0xf]
        %v985 = vunpack.c.l.b16 %v978
        %v986 = vpack.c.b16 %v804, %v985
        %v987 = vrot.slane %v986, 3
        %v988 = vrot.slane %v890, 3
        %v989 = vsel %vm545, %v987, %v988
        %v994 = vunpack.c.l.b16 %v980
        %v995 = vunpack.c.l.b16 %v981
        %v996 = vunpack.c.l.b16 %v982
        %v997 = vunpack.c.l.b16 %v983
        %v998 = vpack.c.b16 %v995, %v994
        %v999 = vpack.c.b16 %v997, %v996
        %v1003 = vsel %vm329, %v989, 0
        %v1006 = vsel %vm329, %v988, 0
        %1008 = vmatprep.subr.bf16.mxu0 0
        %1009 = vmatpush1.bf16.msra.mxu0 %v998
        %1010 = vmatprep.subr.bf16.mxu0 0
        %1011 = vmatpush1.bf16.msra.mxu0 %v999
        %1012 = vmatprep.subr.bf16.mxu0 0
        %1013 = vmatpush1.bf16.msra.mxu0 0
        %1014 = vmatprep.subr.bf16.mxu0 0
        %1015 = vmatpush1.bf16.msra.mxu0 0
        %1016 = vmatprep.subr.bf16.mxu0 0
        %1017 = vmatpush1.bf16.msra.mxu0 0
        %1018 = vmatprep.subr.bf16.mxu0 0
        %1019 = vmatpush1.bf16.msra.mxu0 0
        %1020 = vmatprep.subr.bf16.mxu0 0
        %1021 = vmatpush1.bf16.msra.mxu0 0
        %1022 = vmatprep.subr.bf16.mxu0 0
        %1023 = vmatpush1.bf16.msra.mxu0 0
        %1024 = vmatprep.subr.bf16.mxu0 0
        %1025 = vmatpush1.bf16.msra.mxu0 0
        %1026 = vmatprep.subr.bf16.mxu0 0
        %1027 = vmatpush1.bf16.msra.mxu0 0
        %1028 = vmatprep.subr.bf16.mxu0 0
        %1029 = vmatpush1.bf16.msra.mxu0 0
        %1030 = vmatprep.subr.bf16.mxu0 0
        %1031 = vmatpush1.bf16.msra.mxu0 0
        %1032 = vmatprep.subr.bf16.mxu0 0
        %1033 = vmatpush1.bf16.msra.mxu0 0
        %1034 = vmatprep.subr.bf16.mxu0 0
        %1035 = vmatpush1.bf16.msra.mxu0 0
        %1036 = vmatprep.subr.bf16.mxu0 0
        %1037 = vmatpush1.bf16.msra.mxu0 0
        %1038 = vmatprep.subr.bf16.mxu0 0
        %1039 = vmatpush1.bf16.msra.mxu0 0
        %1040 = vmatprep.mubr.bf16.mxu0 0
        %1041 = vmatmul.mubr.bf16.gmra.mrb[0].mxu0 %v1003
        %v1042 = vpop.f32.mrb[0].mxu0
        %v1043 = vadd.f32 0.0, %v1042
        %v1044 = vpop.f32.mrb[0].mxu0
        %v1045 = vpop.f32.mrb[0].mxu0
        %v1046 = vadd.f32 0.0, %v1045
        %v1047 = vpop.f32.mrb[0].mxu0
        %1048 = vmatprep.mubr.bf16.mxu0 0
        %1049 = vmatmul.mubr.bf16.gmra.mrb[0].mxu0 %v1006
        %v1050 = vpop.f32.mrb[0].mxu0
        %v1051 = vadd.f32 0.0, %v1050
        %v1052 = vpop.f32.mrb[0].mxu0
        %v1053 = vpop.f32.mrb[0].mxu0
        %v1054 = vpop.f32.mrb[0].mxu0
        %1055 = vdwg.mxu0
        %v1056 = vadd.f32 %v975, %v1043
        %v1057 = vadd.f32 %v976, %v1046
        %v1058 = vadd.f32 %v977, %v1051
        %v1059 = vld [vmem:[%s273] sm:$0x1]
        %v1061 = vlaneseq
        %v1062 = vshrl.u32 %v1061, 7
        %v1063 = vsub.s32 0, %v1062
        %v1064 = vrot.slane %v1059, %v1063
        %v1066 = vmul.f32 %v1056, %v1064
        %v1067 = vmul.f32 %v1057, %v1064
        %v1068 = vmul.f32 %v1058, %v1064
        %v1069 = vld [vmem:[%s276] sm:$0x1]
        %v1071 = vlaneseq
        %v1072 = vshrl.u32 %v1071, 7
        %v1073 = vsub.s32 0, %v1072
        %v1074 = vrot.slane %v1069, %v1073
        %v1076 = vadd.f32 %v1066, %v1074
        %v1077 = vadd.f32 %v1067, %v1074
        %v1078 = vadd.f32 %v1068, %v1074
        %v1079 = vmax.f32 %v1076, 0.0
        %v1080 = vmax.f32 %v1077, 0.0
        %v1081 = vmax.f32 %v1078, 0.0
        %1082 = vst [vmem:[%s265] sm:$0xff] %v1079
        %1083 = vst [vmem:[%s265 + $0x8] sm:$0xff] %v1080
        %1084 = vst [vmem:[%s265 + $0x10] sm:$0xff] %v1081
        %s1085 = sand.u32 %s147, 1
        %s1086 = scalar_lea.sflag [#allocation4], %s1085
        %s1087 = sand.u32 %s147, 1
        %s1088 = smul.addr %s1087, 24
        %s1089 = scalar_lea.vmem [#allocation5], %s1088
        // Predicated region
        $region41: #{tpu_custom_call.1} parent=35 // pred_check
          %p1090 = pneg %p157
        $region42: #{tpu_custom_call.1} parent=35 // pred_check_branch
          %1092 = sbr.rel (%p1090) target = $region44
        $region43: #{tpu_custom_call.1} parent=35 // pred_region
          %s1094 = ssub.s32 384, 384
          %1095 = vsyncadd %s1086, %s1094
          %s1096 = smul.addr %s26, 12
          %s1097 = sadd.s32 %s25, %s1096
          %s1098 = smul.addr %s1097, 128
          %s1099 = scalar_lea.hbm %s4, %s1098
          %s1100 = sshll.u32 %s1089, 4
          %s1101 = int_to_ptr.vmem [resolvable:$true] %s1100
          %1106 = dma.vmem_to_hbm [thread:$0]  %s1101, 384, %s1099, %s1086, 128, 512, 8
        $region44: #{tpu_custom_call.1} parent=35 // pred_fallthru
          _
      $region36: #{tpu_custom_call.1} parent=5 // pred_fallthru
        _
      %p1107 = scmp.le.s32.totalorder 2, %s16
      // Predicated region
      $region45: #{tpu_custom_call.1} parent=5 // pred_check
        %p1108 = pneg %p1107
      $region46: #{tpu_custom_call.1} parent=5 // pred_check_branch
        %1110 = sbr.rel (%p1108) target = $region48
      $region47: #{tpu_custom_call.1} parent=5 // pred_region
        %s1111 = ssub.s32 %s16, 2
        // Predicated region
        $region49: #{tpu_custom_call.1} parent=47 // pred_check
          %p1112 = pneg %p163
        $region50: #{tpu_custom_call.1} parent=47 // pred_check_branch
          %1114 = sbr.rel (%p1112) target = $region52
        $region51: #{tpu_custom_call.1} parent=47 // pred_region
          %s1115 = sand.u32 %s148, 1
          %s1116 = scalar_lea.sflag [#allocation4], %s1115
          %s1117 = sand.u32 %s148, 1
          %s1118 = smul.addr %s1117, 24
          %s1119 = scalar_lea.vmem [#allocation5], %s1118
          %1120 = dma.done %s1116, 384
        $region52: #{tpu_custom_call.1} parent=47 // pred_fallthru
          _
      $region48: #{tpu_custom_call.1} parent=5 // pred_fallthru
        _
    $region6: #{tpu_custom_call.1} parent=1 // loop_footer
      %s20 = sadd.s32 1, %s16
    $region7: #{tpu_custom_call.1} parent=1 // loop_footer_branch
      %15 = sbr.rel target = $region3
    $region8: #{tpu_custom_call.1} parent=1 // loop_exit
      _
    %1121 = vsyncpa [#allocation3], 1
    %s1122 = scalar_lea.sflag [#allocation3], 1
    %1123 = vsyncpa %s1122, 1
    %1124 = vsyncpa [#allocation4], 1
    %s1125 = scalar_lea.sflag [#allocation4], 1
    %1126 = vsyncpa %s1125, 1

</llo_original>
